<compile_context>
chip_gen: v6e
topology: v6e:2x2x1
jax: 0.10.0
libtpu: 0.0.40
codegen_flags: <defaults>
</compile_context>

<pallas_src>
import functools

import jax
import jax.numpy as jnp
from jax.experimental import pallas as pl
from jax.experimental.pallas import tpu as pltpu


def _ceil_div(a, b):
    return -(-a // b)


def _round_up(a, b):
    return _ceil_div(a, b) * b


def _sublane_quantum(itemsize):
    # second-to-last-dim packing quantum: f32 -> 8, bf16/f16 -> 16, int8/fp8 -> 32
    return 8 * max(1, 4 // max(1, itemsize))


def _pick_global_tiles(R, S, itemsize, target_bytes=1 << 20):
    """Row / spatial tile sizes for the flat (R=N*C, S=H*W) global-pool kernel."""
    sub = _sublane_quantum(itemsize)

    # Spatial (lane-axis, reduction) tile: largest multiple of 128 dividing S that
    # keeps even a minimum-height (sub-row) block under the budget.  If S is not a
    # multiple of 128, it is used whole (block dim == full array dim is legal).
    if S % 128 == 0 and S > 128:
        ts_cap = max(128, (target_bytes // itemsize) // sub)
        TS = 128
        t = 256
        while t <= min(S, ts_cap):
            if S % t == 0:
                TS = t
            t += 128
    else:
        TS = S
    padded_ts = _round_up(TS, 128)

    # Row (parallel) tile: largest multiple of the sublane quantum dividing R with
    # a lane-padded block <= target_bytes.
    if R % sub == 0 and R > sub:
        tr_cap = max(sub, target_bytes // (padded_ts * itemsize))
        TR = sub
        t = 2 * sub
        while t <= min(R, tr_cap):
            if R % t == 0:
                TR = t
            t += sub
    else:
        TR = R

    # v7x has two TensorCores: ensure >= 2 steps on the parallel (row) axis when
    # that doesn't shrink the block below ~256 KiB.
    if TR == R and R % (2 * sub) == 0:
        if (R // 2) * padded_ts * itemsize >= (256 << 10):
            TR = R // 2

    return TR, TS


def _pick_channel_tile(C, H, W, itemsize, target_bytes=1 << 20):
    """Channel tile for the NCHW general-pool kernel (channels are an outer dim)."""
    sub = _sublane_quantum(itemsize)
    plane_bytes = _round_up(H, sub) * _round_up(W, 128) * itemsize  # padded per-channel plane
    cap = max(1, target_bytes // plane_bytes)
    TC = 1
    for t in range(1, min(C, cap) + 1):
        if C % t == 0:
            TC = t
    return TC


def _maybe_vmem_limit(block_bytes, threshold=8 << 20, cap=60 << 20):
    """Return an explicit vmem limit only when the double-buffered pipeline would
    exceed the default scoped VMEM (can only happen in fallback block sizings)."""
    est = 2 * sum(block_bytes) + (1 << 20)
    if est <= threshold:
        return None
    return min(int(est * 1.25), cap)


# --------------------------------------------------------------------------------
# Kernel 1: global (1x1) adaptive pool on the flat (N*C, H*W) view.
# --------------------------------------------------------------------------------
def _global_pool_kernel(x_ref, max_ref, avg_ref, sum_acc, *, inv_area):
    """One grid step = one (row-tile, spatial-tile) pair.

    x_ref:   (TR, TS)  spatial elements on the 128-lane axis (input dtype)
    max_ref: (TR, 1)   running max (output block resident across the s axis)
    avg_ref: (TR, 1)   written once on the last spatial step
    sum_acc: (TR, 1)   f32 running sum (VMEM scratch)
    """
    s = pl.program_id(1)
    last = pl.num_programs(1) - 1

    x = x_ref[...]
    blk_max = jnp.max(x, axis=1, keepdims=True)                      # (TR, 1)
    blk_sum = jnp.sum(x, axis=1, keepdims=True, dtype=jnp.float32)   # (TR, 1)

    @pl.when(s == 0)
    def _():
        max_ref[...] = blk_max.astype(max_ref.dtype)
        sum_acc[...] = blk_sum

    @pl.when(s > 0)
    def _():
        max_ref[...] = jnp.maximum(max_ref[...], blk_max.astype(max_ref.dtype))
        sum_acc[...] = sum_acc[...] + blk_sum

    @pl.when(s == last)
    def _():
        avg_ref[...] = (sum_acc[...] * inv_area).astype(avg_ref.dtype)


# --------------------------------------------------------------------------------
# Kernel 2: general adaptive pooling, NCHW blocks (W on lanes, C an outer dim).
# --------------------------------------------------------------------------------
def _adaptive_pool_kernel(x_ref, max_ref, avg_ref, *, out_hw):
    """One grid step = one (batch, channel-tile) pair.

    x_ref:   (1, TC, H, W)
    max_ref: (1, TC, OH, OW)
    avg_ref: (1, TC, OH, OW)
    """
    OH, OW = out_hw
    _, TC, H, W = x_ref.shape
    x = x_ref[0, :, :, :]  # (TC, H, W), input dtype

    # Statically unrolled PyTorch floor/ceil window rule.  Window results are
    # assembled in registers and written with one dense store per output ref
    # (no per-window masked (1,1) stores).
    max_rows, avg_rows = [], []
    for oh in range(OH):
        h0 = (oh * H) // OH
        h1 = _ceil_div((oh + 1) * H, OH)
        max_cols, avg_cols = [], []
        for ow in range(OW):
            w0 = (ow * W) // OW
            w1 = _ceil_div((ow + 1) * W, OW)
            win = x[:, h0:h1, w0:w1]                                  # (TC, kh, kw)
            mx = jnp.max(win, axis=(1, 2), keepdims=True)             # (TC, 1, 1)
            sm = jnp.sum(win, axis=(1, 2), keepdims=True,
                         dtype=jnp.float32)                           # (TC, 1, 1)
            inv_area = 1.0 / float((h1 - h0) * (w1 - w0))
            max_cols.append(mx)
            avg_cols.append(sm * inv_area)
        max_rows.append(jnp.concatenate(max_cols, axis=2))            # (TC, 1, OW)
        avg_rows.append(jnp.concatenate(avg_cols, axis=2))
    max_full = jnp.concatenate(max_rows, axis=1)                      # (TC, OH, OW)
    avg_full = jnp.concatenate(avg_rows, axis=1)

    max_ref[0, :, :, :] = max_full.astype(max_ref.dtype)
    avg_ref[0, :, :, :] = avg_full.astype(avg_ref.dtype)


# --------------------------------------------------------------------------------
# Wrapper
# --------------------------------------------------------------------------------
def adaptive_concat_pool2d(x, output_size=1):
    """Pallas implementation of AdaptiveConcatPooll2d.forward.

    x: (N, C, H, W). Returns (N, 2*C, OH, OW) with max in [0:C], avg in [C:2C].
    """
    N, C, H, W = x.shape
    if output_size is None:
        OH, OW = H, W
    elif isinstance(output_size, int):
        OH = OW = output_size
    else:
        oh, ow = output_size
        OH = H if oh is None else oh
        OW = W if ow is None else ow

    itemsize = jnp.dtype(x.dtype).itemsize
    sub = _sublane_quantum(itemsize)

    if OH == 1 and OW == 1:
        # ---- canonical global pool: flat (N*C, H*W) lane reduction, no transpose ----
        R, S = N * C, H * W
        x_flat = x.reshape(R, S)  # contiguous NCHW reshape: free, no HBM copy
        TR, TS = _pick_global_tiles(R, S, itemsize)
        n_r, n_s = R // TR, S // TS

        in_block = _round_up(TR, sub) * _round_up(TS, 128) * itemsize
        out_block = _round_up(TR, sub) * 128 * itemsize
        vmem_limit = _maybe_vmem_limit([in_block, out_block, out_block])

        kernel = functools.partial(_global_pool_kernel, inv_area=1.0 / float(S))
        max_flat, avg_flat = pl.pallas_call(
            kernel,
            out_shape=(
                jax.ShapeDtypeStruct((R, 1), x.dtype),
                jax.ShapeDtypeStruct((R, 1), x.dtype),
            ),
            grid=(n_r, n_s),
            in_specs=[pl.BlockSpec((TR, TS), lambda r, s: (r, s))],
            out_specs=(
                pl.BlockSpec((TR, 1), lambda r, s: (r, 0)),
                pl.BlockSpec((TR, 1), lambda r, s: (r, 0)),
            ),
            scratch_shapes=[pltpu.VMEM((TR, 1), jnp.float32)],
            compiler_params=pltpu.CompilerParams(
                dimension_semantics=("parallel", "arbitrary"),
                vmem_limit_bytes=vmem_limit,
            ),
        )(x_flat)

        max_out = max_flat.reshape(N, C, 1, 1)
        avg_out = avg_flat.reshape(N, C, 1, 1)
        # torch.cat([max, avg], dim=1) on the tiny pooled maps only.
        return jnp.concatenate([max_out, avg_out], axis=1)

    if (OH, OW) == (H, W):
        # Identity windows (output size == input size): max == avg == x.
        return jnp.concatenate([x, x], axis=1)

    # ---- general adaptive pooling: NCHW blocks, channels stay an outer dim ----
    TC = _pick_channel_tile(C, H, W, itemsize)
    n_c = C // TC

    in_block = TC * _round_up(H, sub) * _round_up(W, 128) * itemsize
    out_block = TC * _round_up(OH, sub) * _round_up(OW, 128) * itemsize
    vmem_limit = _maybe_vmem_limit([in_block, out_block, out_block])

    kernel = functools.partial(_adaptive_pool_kernel, out_hw=(OH, OW))
    max_out, avg_out = pl.pallas_call(
        kernel,
        out_shape=(
            jax.ShapeDtypeStruct((N, C, OH, OW), x.dtype),
            jax.ShapeDtypeStruct((N, C, OH, OW), x.dtype),
        ),
        grid=(N, n_c),
        in_specs=[pl.BlockSpec((1, TC, H, W), lambda n, c: (n, c, 0, 0))],
        out_specs=(
            pl.BlockSpec((1, TC, OH, OW), lambda n, c: (n, c, 0, 0)),
            pl.BlockSpec((1, TC, OH, OW), lambda n, c: (n, c, 0, 0)),
        ),
        compiler_params=pltpu.CompilerParams(
            dimension_semantics=("parallel", "parallel"),
            vmem_limit_bytes=vmem_limit,
        ),
    )(x)

    return jnp.concatenate([max_out, avg_out], axis=1)


# --------------------------------------------------------------------------------
# Plain-JAX reference (same floor/ceil window rule as PyTorch adaptive pooling)
# --------------------------------------------------------------------------------
def _reference(x, output_size=1):
    N, C, H, W = x.shape
    if output_size is None:
        OH, OW = H, W
    elif isinstance(output_size, int):
        OH = OW = output_size
    else:
        oh, ow = output_size
        OH = H if oh is None else oh
        OW = W if ow is None else ow

    max_out = jnp.zeros((N, C, OH, OW), x.dtype)
    avg_out = jnp.zeros((N, C, OH, OW), x.dtype)
    for oh in range(OH):
        h0 = (oh * H) // OH
        h1 = _ceil_div((oh + 1) * H, OH)
        for ow in range(OW):
            w0 = (ow * W) // OW
            w1 = _ceil_div((ow + 1) * W, OW)
            win = x[:, :, h0:h1, w0:w1]
            max_out = max_out.at[:, :, oh, ow].set(jnp.max(win, axis=(2, 3)))
            avg_out = avg_out.at[:, :, oh, ow].set(jnp.mean(win, axis=(2, 3)))
    return jnp.concatenate([max_out, avg_out], axis=1)


if __name__ == "__main__":
    key = jax.random.PRNGKey(0)
    N, C, H, W = 2, 4, 16, 16
    x = jax.random.normal(key, (N, C, H, W), dtype=jnp.float32)

    # Canonical AdaptiveConcatPool usage: global 1x1 pool (flat row-reduction kernel).
    out1 = jax.block_until_ready(adaptive_concat_pool2d(x, output_size=1))
    ref1 = _reference(x, output_size=1)
    assert out1.shape == (N, 2 * C, 1, 1), out1.shape
    assert jnp.allclose(out1, ref1, atol=1e-5, rtol=1e-5), "global-pool mismatch"

    # General adaptive pooling (non-divisible 3x3 windows -> NCHW block kernel).
    out2 = jax.block_until_ready(adaptive_concat_pool2d(x, output_size=3))
    ref2 = _reference(x, output_size=3)
    assert out2.shape == (N, 2 * C, 3, 3), out2.shape
    assert jnp.allclose(out2, ref2, atol=1e-5, rtol=1e-5), "adaptive-pool mismatch"

    print("KERNEL_OK")
</pallas_src>

<mosaic_0001>
module attributes {stable_mosaic.version = 11 : i64} {
  func.func @_global_pool_kernel(%arg0: i32, %arg1: i32, %arg2: memref<8x256xf32, #tpu.memory_space<vmem>>, %arg3: memref<8x1xf32, #tpu.memory_space<vmem>>, %arg4: memref<8x1xf32, #tpu.memory_space<vmem>>, %arg5: memref<8x1xf32, #tpu.memory_space<vmem>>) attributes {dimension_semantics = [#tpu.dimension_semantics<parallel>, #tpu.dimension_semantics<arbitrary>], iteration_bounds = array<i64: 1, 1>, scalar_prefetch = 0 : i64, scratch_operands = 1 : i64, tpu.core_type = #tpu.core_type<tc>, window_params = [{transform_indices = @transform_0, window_bounds = array<i64: 8, 256>}, {transform_indices = @transform_1, window_bounds = array<i64: 8, 1>}, {transform_indices = @transform_2, window_bounds = array<i64: 8, 1>}]} {
    %c0 = arith.constant 0 : index
    %c0_0 = arith.constant 0 : index
    %0 = vector.load %arg2[%c0, %c0_0] : memref<8x256xf32, #tpu.memory_space<vmem>>, vector<8x256xf32>
    %cst = arith.constant dense<0xFF800000> : vector<8xf32>
    %1 = vector.multi_reduction <maximumf>, %0, %cst [1] : vector<8x256xf32> to vector<8xf32>
    %2 = vector.shape_cast %1 : vector<8xf32> to vector<8x1xf32>
    %cst_1 = arith.constant dense<0.000000e+00> : vector<8xf32>
    %3 = vector.multi_reduction <add>, %0, %cst_1 [1] : vector<8x256xf32> to vector<8xf32>
    %4 = vector.shape_cast %3 : vector<8xf32> to vector<8x1xf32>
    %c0_i32 = arith.constant 0 : i32
    %5 = arith.cmpi eq, %arg1, %c0_i32 : i32
    %6 = arith.extui %5 : i1 to i32
    %c0_i32_2 = arith.constant 0 : i32
    %7 = arith.cmpi ne, %6, %c0_i32_2 : i32
    scf.if %7 {
      %c0_7 = arith.constant 0 : index
      %c0_8 = arith.constant 0 : index
      %14 = vector.load %arg3[%c0_7, %c0_8] : memref<8x1xf32, #tpu.memory_space<vmem>>, vector<8x1xf32>
      tpu.vector_store %arg3[%c0_7, %c0_8], %2 {strides = array<i32>} : memref<8x1xf32, #tpu.memory_space<vmem>>, vector<8x1xf32>,
      %c0_9 = arith.constant 0 : index
      %c0_10 = arith.constant 0 : index
      %15 = vector.load %arg5[%c0_9, %c0_10] : memref<8x1xf32, #tpu.memory_space<vmem>>, vector<8x1xf32>
      tpu.vector_store %arg5[%c0_9, %c0_10], %4 {strides = array<i32>} : memref<8x1xf32, #tpu.memory_space<vmem>>, vector<8x1xf32>,
    } else {
    }
    %c0_i32_3 = arith.constant 0 : i32
    %8 = arith.cmpi sgt, %arg1, %c0_i32_3 : i32
    %9 = arith.extui %8 : i1 to i32
    %c0_i32_4 = arith.constant 0 : i32
    %10 = arith.cmpi ne, %9, %c0_i32_4 : i32
    scf.if %10 {
      %c0_7 = arith.constant 0 : index
      %c0_8 = arith.constant 0 : index
      %14 = vector.load %arg3[%c0_7, %c0_8] : memref<8x1xf32, #tpu.memory_space<vmem>>, vector<8x1xf32>
      %15 = arith.maximumf %14, %2 : vector<8x1xf32>
      %c0_9 = arith.constant 0 : index
      %c0_10 = arith.constant 0 : index
      %16 = vector.load %arg3[%c0_9, %c0_10] : memref<8x1xf32, #tpu.memory_space<vmem>>, vector<8x1xf32>
      tpu.vector_store %arg3[%c0_9, %c0_10], %15 {strides = array<i32>} : memref<8x1xf32, #tpu.memory_space<vmem>>, vector<8x1xf32>,
      %c0_11 = arith.constant 0 : index
      %c0_12 = arith.constant 0 : index
      %17 = vector.load %arg5[%c0_11, %c0_12] : memref<8x1xf32, #tpu.memory_space<vmem>>, vector<8x1xf32>
      %18 = arith.addf %17, %4 : vector<8x1xf32>
      %c0_13 = arith.constant 0 : index
      %c0_14 = arith.constant 0 : index
      %19 = vector.load %arg5[%c0_13, %c0_14] : memref<8x1xf32, #tpu.memory_space<vmem>>, vector<8x1xf32>
      tpu.vector_store %arg5[%c0_13, %c0_14], %18 {strides = array<i32>} : memref<8x1xf32, #tpu.memory_space<vmem>>, vector<8x1xf32>,
    } else {
    }
    %c0_i32_5 = arith.constant 0 : i32
    %11 = arith.cmpi eq, %arg1, %c0_i32_5 : i32
    %12 = arith.extui %11 : i1 to i32
    %c0_i32_6 = arith.constant 0 : i32
    %13 = arith.cmpi ne, %12, %c0_i32_6 : i32
    scf.if %13 {
      %c0_7 = arith.constant 0 : index
      %c0_8 = arith.constant 0 : index
      %14 = vector.load %arg5[%c0_7, %c0_8] : memref<8x1xf32, #tpu.memory_space<vmem>>, vector<8x1xf32>
      %cst_9 = arith.constant 3.906250e-03 : f32
      %15 = vector.broadcast %cst_9 : f32 to vector<8x1xf32>
      %16 = arith.mulf %14, %15 : vector<8x1xf32>
      %c0_10 = arith.constant 0 : index
      %c0_11 = arith.constant 0 : index
      %17 = vector.load %arg4[%c0_10, %c0_11] : memref<8x1xf32, #tpu.memory_space<vmem>>, vector<8x1xf32>
      tpu.vector_store %arg4[%c0_10, %c0_11], %16 {strides = array<i32>} : memref<8x1xf32, #tpu.memory_space<vmem>>, vector<8x1xf32>,
    } else {
    }
    return
  }
  func.func @transform_0(%arg0: i32, %arg1: i32) -> (i32, i32) {
    %c0_i32 = arith.constant 0 : i32
    return %arg0, %arg1 : i32, i32
  }
  func.func @transform_1(%arg0: i32, %arg1: i32) -> (i32, i32) {
    %c0_i32 = arith.constant 0 : i32
    %c0_i32_0 = arith.constant 0 : i32
    return %arg0, %c0_i32 : i32, i32
  }
  func.func @transform_2(%arg0: i32, %arg1: i32) -> (i32, i32) {
    %c0_i32 = arith.constant 0 : i32
    %c0_i32_0 = arith.constant 0 : i32
    return %arg0, %c0_i32 : i32, i32
  }
}

</mosaic_0001>

<llo_original>
// kernel: tpu_custom_call.1
$region0: #{tpu_custom_call.1}
  #allocation0 [shape = 'u32[]', space=smem, size = 0x4, offset = 0x4, fixed_abs, tag = 'smem constant byte address 0x4 - core index']
  #allocation1 [shape = 'u32[144,128]{1,0:T(1,128)}', space=vmem, size = 0x12000, scoped, tag = 'internal scratch']
  #allocation2 [shape = 'f32[8,1]{1,0:T(8,128)}', space=vmem, size = 0x1000, scoped, tag = 'scratch operand']
  %s0 = inlined_call_operand.hbm [shape: f32[8,256], index: 0, kind: input, shape index: {}]
  %s1 = inlined_call_operand.vmem [shape: f32[8,1], index: 1, kind: output, shape index: {0}]
  %s2 = inlined_call_operand.vmem [shape: f32[8,1], index: 2, kind: output, shape index: {1}]
  %3 = xla_tuple %s1, %s2
  %s4 = sld [smem:[#allocation0]]
  $region38: #{tpu_custom_call.1} parent=0
    _
  %s6 = ssub.s32 1, %s4
  %s7 = scalar_select 0, %s6, %s4
  $region1: #{tpu_custom_call.1} parent=0
    #allocation3 [shape = 'u8[8192]{0}', space=vmem, size = 0x2000, scoped, tag = 'input window, operand 0, single buffered']
    #allocation4 [shape = 's32[1]{0}', space=sflag, size = 0x4, scoped, tag = 'scoped memory for tpu_custom_call.1']
    %8 = vsyncpa [#allocation4], 0
    // Predicated region
    $region2: #{tpu_custom_call.1} parent=1 // pred_check
      _
    $region3: #{tpu_custom_call.1} parent=1 // pred_check_branch
      %10 = sbr.rel (0) target = $region5
    $region4: #{tpu_custom_call.1} parent=1 // pred_region
      %s12 = ssub.s32 256, 256
      %13 = vsyncadd [#allocation4], %s12
      %s15 = sshll.u32 [#allocation3], 4
      %s16 = int_to_ptr.vmem [resolvable:$true] %s15
      %18 = dma.hbm_to_vmem [thread:$0]  %s0, 256, %s16, [#allocation4]
    $region5: #{tpu_custom_call.1} parent=1 // pred_fallthru
      _
    // Predicated region
    $region6: #{tpu_custom_call.1} parent=1 // pred_check
      _
    $region7: #{tpu_custom_call.1} parent=1 // pred_check_branch
      %20 = sbr.rel (0) target = $region9
    $region8: #{tpu_custom_call.1} parent=1 // pred_region
      %21 = dma.done [#allocation4], 256
    $region9: #{tpu_custom_call.1} parent=1 // pred_fallthru
      _
    %v22 = vld [vmem:[#allocation3] sm:$0xff]
    %v23 = vld [vmem:[#allocation3 + $0x8] sm:$0xff]
    %v24 = vmax.f32 %v22, %v23
    %25 = vmax.xlane.f32.xlu0 %v24
    %v26 = vpop.xlane.xlu0 %25
    %v27 = vadd.f32 %v22, %v23
    %28 = vadd.xlane.f32.xlu0 %v27
    %v29 = vpop.xlane.xlu0 %28
    %p30 = scmp.eq.s32.totalorder 0, 0
    // Predicated region
    $region10: #{tpu_custom_call.1} parent=1 // pred_check
      %p31 = pneg %p30
    $region11: #{tpu_custom_call.1} parent=1 // pred_check_branch
      %33 = sbr.rel (%p31) target = $region13
    $region12: #{tpu_custom_call.1} parent=1 // pred_region
      %vm34 = vcmask 7168
      %35 = vst.msk [vmem:[%s1] sm:$0xff] %vm34, %v26
      %36 = vst.msk [vmem:[#allocation2] sm:$0xff] %vm34, %v29
    $region13: #{tpu_custom_call.1} parent=1 // pred_fallthru
      _
    %p37 = scmp.gt.s32.totalorder 0, 0
    // Predicated region
    $region14: #{tpu_custom_call.1} parent=1 // pred_check
      %p38 = pneg %p37
    $region15: #{tpu_custom_call.1} parent=1 // pred_check_branch
      %40 = sbr.rel (%p38) target = $region17
    $region16: #{tpu_custom_call.1} parent=1 // pred_region
      %v41 = vld [vmem:[%s1] sm:$0xff]
      %v42 = vmax.f32 %v41, %v26
      %vm43 = vcmask 7168
      %44 = vst.msk [vmem:[%s1] sm:$0xff] %vm43, %v42
      %v45 = vld [vmem:[#allocation2] sm:$0xff]
      %v46 = vadd.f32 %v45, %v29
      %47 = vst.msk [vmem:[#allocation2] sm:$0xff] %vm43, %v46
    $region17: #{tpu_custom_call.1} parent=1 // pred_fallthru
      _
    // Predicated region
    $region18: #{tpu_custom_call.1} parent=1 // pred_check
      %p48 = pneg %p30
    $region19: #{tpu_custom_call.1} parent=1 // pred_check_branch
      %50 = sbr.rel (%p48) target = $region21
    $region20: #{tpu_custom_call.1} parent=1 // pred_region
      %v51 = vld [vmem:[#allocation2] sm:$0xff]
      %v52 = vmul.f32 %v51, 0.00390625
      %vm53 = vcmask 7168
      %54 = vst.msk [vmem:[%s2] sm:$0xff] %vm53, %v52
    $region21: #{tpu_custom_call.1} parent=1 // pred_fallthru
      _
    // Predicated region
    $region22: #{tpu_custom_call.1} parent=1 // pred_check
      _
    $region23: #{tpu_custom_call.1} parent=1 // pred_check_branch
      %56 = sbr.rel (0) target = $region25
    $region24: #{tpu_custom_call.1} parent=1 // pred_region
      _
    $region25: #{tpu_custom_call.1} parent=1 // pred_fallthru
      _
    // Predicated region
    $region26: #{tpu_custom_call.1} parent=1 // pred_check
      _
    $region27: #{tpu_custom_call.1} parent=1 // pred_check_branch
      %58 = sbr.rel (0) target = $region29
    $region28: #{tpu_custom_call.1} parent=1 // pred_region
      _
    $region29: #{tpu_custom_call.1} parent=1 // pred_fallthru
      _
    // Predicated region
    $region30: #{tpu_custom_call.1} parent=1 // pred_check
      _
    $region31: #{tpu_custom_call.1} parent=1 // pred_check_branch
      %60 = sbr.rel (0) target = $region33
    $region32: #{tpu_custom_call.1} parent=1 // pred_region
      _
    $region33: #{tpu_custom_call.1} parent=1 // pred_fallthru
      _
    // Predicated region
    $region34: #{tpu_custom_call.1} parent=1 // pred_check
      _
    $region35: #{tpu_custom_call.1} parent=1 // pred_check_branch
      %62 = sbr.rel (0) target = $region37
    $region36: #{tpu_custom_call.1} parent=1 // pred_region
      _
    $region37: #{tpu_custom_call.1} parent=1 // pred_fallthru
      _
    %63 = vsyncpa [#allocation4], 1

</llo_original>
